<compile_context>
chip_gen: v7x
topology: tpu7x:2x2x1
jax: 0.10.0
libtpu: 0.0.40
codegen_flags: <defaults>
</compile_context>

<pallas_src>
import jax
import jax.numpy as jnp
from jax.experimental import pallas as pl
from jax.experimental.pallas import tpu as pltpu


def _sigmoid(v):
    # explicit formula -> guaranteed Mosaic lowering (exp on EUP)
    return 1.0 / (1.0 + jnp.exp(-v))


def _scse_kernel(x_ref, w1t_ref, w2_ref, wst_ref, o_ref):
    # x_ref:   (1, ch, S)  one batch element; channels on sublanes, spatial on lanes
    # w1t_ref: (ch, cr)    cSE Linear1 weight, transposed (PyTorch weight is (cr, ch))
    # w2_ref:  (ch, cr)    cSE Linear2 weight (PyTorch layout is already (ch, cr))
    # wst_ref: (ch, cr)    sSE Linear weight, transposed
    # o_ref:   (1, ch, S)
    x = x_ref[0]                                              # (ch, S) f32

    # ---- cSE: global average pool + 2-layer MLP + sigmoid (per-channel gate) ----
    p = jnp.mean(x, axis=1, keepdims=True)                    # (ch, 1)  lane reduction
    h = jnp.sum(w1t_ref[...] * p, axis=0, keepdims=True)      # (1, cr)  sublane reduction
    h = jnp.maximum(h, 0.0)                                   # ReLU
    z = jnp.sum(w2_ref[...] * h, axis=1, keepdims=True)       # (ch, 1)
    z = _sigmoid(z)

    # ---- sSE: per-position Linear(ch -> 1) + sigmoid (per-position gate) ----
    g = jnp.sum(x * wst_ref[...], axis=0, keepdims=True)      # (1, S)   sublane reduction
    g = _sigmoid(g)

    # x * cSE(x) + x * sSE(x)  ==  x * (z + g)   — lane-dense store
    o_ref[0] = x * (z + g)


def scse_linear_forward(x, cse_w1, cse_w2, sse_w):
    """x: (N, ch, D, H, W) NCDHW float32.
       Weights in PyTorch nn.Linear layout:
         cse_w1 (ch//re, ch), cse_w2 (ch, ch//re), sse_w (ch//re, ch)."""
    N, ch, D, H, W = x.shape
    cr = cse_w1.shape[0]
    assert cr == 1, "x * sSE(x) broadcast requires ch // re == 1 (canonical SCSE)"
    S = D * H * W
    x2 = x.reshape(N, ch, S)                # row-major layout unchanged (metadata only)

    out = pl.pallas_call(
        _scse_kernel,
        out_shape=jax.ShapeDtypeStruct((N, ch, S), x.dtype),
        grid=(N,),
        in_specs=[
            pl.BlockSpec((1, ch, S), lambda n: (n, 0, 0)),
            pl.BlockSpec((ch, cr), lambda n: (0, 0)),
            pl.BlockSpec((ch, cr), lambda n: (0, 0)),
            pl.BlockSpec((ch, cr), lambda n: (0, 0)),
        ],
        out_specs=pl.BlockSpec((1, ch, S), lambda n: (n, 0, 0)),
        compiler_params=pltpu.CompilerParams(
            dimension_semantics=("parallel",)),
    )(x2, cse_w1.T, cse_w2, sse_w.T)
    return out.reshape(N, ch, D, H, W)


def scse_linear_ref(x, cse_w1, cse_w2, sse_w):
    """Pure-JAX reference of the intended semantics (for the correctness check)."""
    p = jnp.mean(x, axis=(2, 3, 4))                           # (N, ch)
    h = jnp.maximum(p @ cse_w1.T, 0.0)                        # (N, cr)
    z = _sigmoid(h @ cse_w2.T)                                # (N, ch)
    cse = x * z[:, :, None, None, None]
    xc = jnp.moveaxis(x, 1, -1)                               # (N, D, H, W, ch)
    g = _sigmoid(xc @ sse_w.T)                                # (N, D, H, W, 1)
    sse = jnp.moveaxis(xc * g, -1, 1)
    return cse + sse


if __name__ == "__main__":
    ch, re = 16, 16
    cr = ch // re                                             # == 1
    N, D, H, W = 2, 4, 8, 8                                   # S = 256 (lane-dense)

    key = jax.random.PRNGKey(0)
    k0, k1, k2, k3 = jax.random.split(key, 4)
    x = jax.random.normal(k0, (N, ch, D, H, W), jnp.float32)
    cse_w1 = jax.random.normal(k1, (cr, ch), jnp.float32) * 0.5   # nn.Linear(ch, ch//re)
    cse_w2 = jax.random.normal(k2, (ch, cr), jnp.float32) * 0.5   # nn.Linear(ch//re, ch)
    sse_w = jax.random.normal(k3, (cr, ch), jnp.float32) * 0.5    # nn.Linear(ch, ch//re)

    out = scse_linear_forward(x, cse_w1, cse_w2, sse_w)
    jax.block_until_ready(out)

    ref = scse_linear_ref(x, cse_w1, cse_w2, sse_w)
    assert out.shape == (N, ch, D, H, W)
    assert jnp.allclose(out, ref, rtol=1e-4, atol=1e-4), float(jnp.max(jnp.abs(out - ref)))
    print("KERNEL_OK")
</pallas_src>

<mosaic_0001>
module attributes {stable_mosaic.version = 11 : i64} {
  func.func @_scse_kernel(%arg0: i32, %arg1: memref<1x16x256xf32, #tpu.memory_space<vmem>>, %arg2: memref<16x1xf32, #tpu.memory_space<vmem>>, %arg3: memref<16x1xf32, #tpu.memory_space<vmem>>, %arg4: memref<16x1xf32, #tpu.memory_space<vmem>>, %arg5: memref<1x16x256xf32, #tpu.memory_space<vmem>>) attributes {dimension_semantics = [#tpu.dimension_semantics<parallel>], iteration_bounds = array<i64: 2>, scalar_prefetch = 0 : i64, scratch_operands = 0 : i64, tpu.core_type = #tpu.core_type<tc>, window_params = [{transform_indices = @transform_0, window_bounds = array<i64: 1, 16, 256>}, {pipeline_mode = #tpu.pipeline_mode<synchronous>, transform_indices = @transform_1, window_bounds = array<i64: 16, 1>}, {pipeline_mode = #tpu.pipeline_mode<synchronous>, transform_indices = @transform_2, window_bounds = array<i64: 16, 1>}, {pipeline_mode = #tpu.pipeline_mode<synchronous>, transform_indices = @transform_3, window_bounds = array<i64: 16, 1>}, {transform_indices = @transform_4, window_bounds = array<i64: 1, 16, 256>}]} {
    %c0 = arith.constant 0 : index
    %c0_0 = arith.constant 0 : index
    %c0_1 = arith.constant 0 : index
    %0 = vector.load %arg1[%c0, %c0_0, %c0_1] : memref<1x16x256xf32, #tpu.memory_space<vmem>>, vector<1x16x256xf32>
    %1 = vector.shape_cast %0 : vector<1x16x256xf32> to vector<16x256xf32>
    %cst = arith.constant dense<0.000000e+00> : vector<16xf32>
    %2 = vector.multi_reduction <add>, %1, %cst [1] : vector<16x256xf32> to vector<16xf32>
    %3 = vector.shape_cast %2 : vector<16xf32> to vector<16x1xf32>
    %cst_2 = arith.constant 2.560000e+02 : f32
    %4 = vector.broadcast %cst_2 : f32 to vector<16x1xf32>
    %5 = arith.divf %3, %4 : vector<16x1xf32>
    %c0_3 = arith.constant 0 : index
    %c0_4 = arith.constant 0 : index
    %6 = vector.load %arg2[%c0_3, %c0_4] : memref<16x1xf32, #tpu.memory_space<vmem>>, vector<16x1xf32>
    %7 = arith.mulf %6, %5 : vector<16x1xf32>
    %cst_5 = arith.constant dense<0.000000e+00> : vector<1xf32>
    %8 = vector.multi_reduction <add>, %7, %cst_5 [0] : vector<16x1xf32> to vector<1xf32>
    %9 = vector.shape_cast %8 : vector<1xf32> to vector<1x1xf32>
    %cst_6 = arith.constant 0.000000e+00 : f32
    %10 = vector.broadcast %cst_6 : f32 to vector<1x1xf32>
    %11 = arith.maximumf %9, %10 : vector<1x1xf32>
    %c0_7 = arith.constant 0 : index
    %c0_8 = arith.constant 0 : index
    %12 = vector.load %arg3[%c0_7, %c0_8] : memref<16x1xf32, #tpu.memory_space<vmem>>, vector<16x1xf32>
    %13 = vector.broadcast %11 : vector<1x1xf32> to vector<16x1xf32>
    %14 = arith.mulf %12, %13 : vector<16x1xf32>
    %cst_9 = arith.constant dense<0.000000e+00> : vector<16xf32>
    %15 = vector.multi_reduction <add>, %14, %cst_9 [1] : vector<16x1xf32> to vector<16xf32>
    %16 = vector.shape_cast %15 : vector<16xf32> to vector<16x1xf32>
    %cst_10 = arith.constant 0.000000e+00 : f32
    %17 = vector.broadcast %cst_10 : f32 to vector<16x1xf32>
    %18 = arith.subf %17, %16 : vector<16x1xf32>
    %19 = math.exp %18 : vector<16x1xf32>
    %cst_11 = arith.constant 1.000000e+00 : f32
    %20 = vector.broadcast %cst_11 : f32 to vector<16x1xf32>
    %21 = arith.addf %20, %19 : vector<16x1xf32>
    %cst_12 = arith.constant 1.000000e+00 : f32
    %22 = vector.broadcast %cst_12 : f32 to vector<16x1xf32>
    %23 = arith.divf %22, %21 : vector<16x1xf32>
    %c0_13 = arith.constant 0 : index
    %c0_14 = arith.constant 0 : index
    %24 = vector.load %arg4[%c0_13, %c0_14] : memref<16x1xf32, #tpu.memory_space<vmem>>, vector<16x1xf32>
    %25 = vector.broadcast %24 : vector<16x1xf32> to vector<16x256xf32>
    %26 = arith.mulf %1, %25 : vector<16x256xf32>
    %cst_15 = arith.constant dense<0.000000e+00> : vector<256xf32>
    %27 = vector.multi_reduction <add>, %26, %cst_15 [0] : vector<16x256xf32> to vector<256xf32>
    %28 = vector.shape_cast %27 : vector<256xf32> to vector<1x256xf32>
    %cst_16 = arith.constant 0.000000e+00 : f32
    %29 = vector.broadcast %cst_16 : f32 to vector<1x256xf32>
    %30 = arith.subf %29, %28 : vector<1x256xf32>
    %31 = math.exp %30 : vector<1x256xf32>
    %cst_17 = arith.constant 1.000000e+00 : f32
    %32 = vector.broadcast %cst_17 : f32 to vector<1x256xf32>
    %33 = arith.addf %32, %31 : vector<1x256xf32>
    %cst_18 = arith.constant 1.000000e+00 : f32
    %34 = vector.broadcast %cst_18 : f32 to vector<1x256xf32>
    %35 = arith.divf %34, %33 : vector<1x256xf32>
    %36 = vector.broadcast %23 : vector<16x1xf32> to vector<16x256xf32>
    %37 = vector.broadcast %35 : vector<1x256xf32> to vector<16x256xf32>
    %38 = arith.addf %36, %37 : vector<16x256xf32>
    %39 = arith.mulf %1, %38 : vector<16x256xf32>
    %c0_19 = arith.constant 0 : index
    %c0_20 = arith.constant 0 : index
    %c0_21 = arith.constant 0 : index
    %40 = vector.load %arg5[%c0_19, %c0_20, %c0_21] : memref<1x16x256xf32, #tpu.memory_space<vmem>>, vector<1x16x256xf32>
    %41 = vector.shape_cast %40 : vector<1x16x256xf32> to vector<16x256xf32>
    %42 = vector.shape_cast %39 : vector<16x256xf32> to vector<1x16x256xf32>
    tpu.vector_store %arg5[%c0_19, %c0_20, %c0_21], %42 {strides = array<i32>} : memref<1x16x256xf32, #tpu.memory_space<vmem>>, vector<1x16x256xf32>,
    return
  }
  func.func @transform_0(%arg0: i32) -> (i32, i32, i32) {
    %c0_i32 = arith.constant 0 : i32
    %c0_i32_0 = arith.constant 0 : i32
    %c0_i32_1 = arith.constant 0 : i32
    return %arg0, %c0_i32, %c0_i32_0 : i32, i32, i32
  }
  func.func @transform_1(%arg0: i32) -> (i32, i32) {
    %c0_i32 = arith.constant 0 : i32
    %c0_i32_0 = arith.constant 0 : i32
    %c0_i32_1 = arith.constant 0 : i32
    return %c0_i32, %c0_i32_0 : i32, i32
  }
  func.func @transform_2(%arg0: i32) -> (i32, i32) {
    %c0_i32 = arith.constant 0 : i32
    %c0_i32_0 = arith.constant 0 : i32
    %c0_i32_1 = arith.constant 0 : i32
    return %c0_i32, %c0_i32_0 : i32, i32
  }
  func.func @transform_3(%arg0: i32) -> (i32, i32) {
    %c0_i32 = arith.constant 0 : i32
    %c0_i32_0 = arith.constant 0 : i32
    %c0_i32_1 = arith.constant 0 : i32
    return %c0_i32, %c0_i32_0 : i32, i32
  }
  func.func @transform_4(%arg0: i32) -> (i32, i32, i32) {
    %c0_i32 = arith.constant 0 : i32
    %c0_i32_0 = arith.constant 0 : i32
    %c0_i32_1 = arith.constant 0 : i32
    return %arg0, %c0_i32, %c0_i32_0 : i32, i32, i32
  }
}

</mosaic_0001>

<llo_original>
// kernel: tpu_custom_call.1
$region0: #{tpu_custom_call.1}
  #allocation0 [shape = 'u32[]', space=smem, size = 0x4, offset = 0x4, fixed_abs, tag = 'smem constant byte address 0x4 - core index']
  #allocation1 [shape = 'u32[144,128]{1,0:T(1,128)}', space=vmem, size = 0x12000, scoped, tag = 'internal scratch']
  %s0 = inlined_call_operand.hbm [shape: f32[2,16,256], index: 0, kind: input, shape index: {}]
  %s1 = inlined_call_operand.vmem [shape: f32[16,1], index: 1, kind: input, shape index: {}]
  %s2 = inlined_call_operand.vmem [shape: f32[16,1], index: 2, kind: input, shape index: {}]
  %s3 = inlined_call_operand.vmem [shape: f32[16,1], index: 3, kind: input, shape index: {}]
  %s4 = inlined_call_operand.hbm [shape: f32[2,16,256], index: 4, kind: output, shape index: {}]
  %s5 = sld [smem:[#allocation0]]
  $region53: #{tpu_custom_call.1} parent=0
    _
  %s7 = ssub.s32 1, %s5
  %s8 = scalar_select 0, %s7, %s5
  $region1: #{tpu_custom_call.1} parent=0
    #allocation2 [shape = 'u8[32768]{0}', space=vmem, size = 0x8000, scoped, tag = 'input window, operand 0']
    #allocation3 [shape = 's32[2]{0}', space=sflag, size = 0x8, scoped, tag = 'scoped memory for tpu_custom_call.1']
    #allocation4 [shape = 's32[2]{0}', space=sflag, size = 0x8, scoped, tag = 'scoped memory for tpu_custom_call.1']
    #allocation5 [shape = 'u8[32768]{0}', space=vmem, size = 0x8000, scoped, tag = 'output window, operand 0']
    %9 = vsyncpa [#allocation3], 0
    %s10 = scalar_lea.sflag [#allocation3], 1
    %11 = vsyncpa %s10, 0
    %12 = vsyncpa [#allocation4], 0
    %s13 = scalar_lea.sflag [#allocation4], 1
    %14 = vsyncpa %s13, 0
    loop: start=0, step=1, limit=4
    $region2: #{tpu_custom_call.1} parent=1 // loop_pre_header
      _
    $region3: #{tpu_custom_call.1} parent=1 // loop_header
      %s16 = sphi 0, %s20
      %p17 = scmp.ge.s32.totalorder %s16, 4
      %s26 = sphi 0, %s28
      %s29 = sphi 0, %s26
      %s30 = sphi 0, %s29
      %s46 = sphi 0, %s30
      %s50 = sphi 0, %s50
      %s52 = sphi 0, %s50
      %s53 = sphi 0, %s52
      %s67 = sphi 0, %s53
      %s71 = sphi 0, %s71
      %s73 = sphi 0, %s71
      %s74 = sphi 0, %s73
      %s88 = sphi 0, %s74
      %s92 = sphi 0, %s92
      %s94 = sphi 0, %s92
      %s95 = sphi 0, %s94
      %s109 = sphi 0, %s95
      %s115 = sphi 0, %s117
      %s118 = sphi 0, %s115
      %s119 = sphi 0, %s118
      %s135 = sphi 0, %s119
    $region4: #{tpu_custom_call.1} parent=1 // loop_header_branch
      %19 = sbr.rel (%p17) target = $region8
    $region5: #{tpu_custom_call.1} parent=1 // loop_body
      %s21 = ssub.s32 %s16, 1
      %s22 = ssub.s32 %s16, 2
      %s23 = sadd.s32 %s16, 1
      %s24 = ssub.s32 %s16, %s23
      %p25 = scmp.eq.s32.totalorder %s24, 0
      %s27 = sadd.s32 %s26, 1
      %s28 = scalar_select %p25, %s26, %s27
      %p31 = pneg %p25
      %p32 = scmp.eq.s32.totalorder %s16, 1
      %p33 = por %p31, %p32
      %p34 = scmp.ne.s32.totalorder %s26, %s29
      %p35 = scmp.eq.s32.totalorder %s16, 0
      %p36 = por %p34, %p35
      %p37 = scmp.ne.s32.totalorder %s26, %s29
      %p38 = scmp.eq.s32.totalorder %s21, 1
      %p39 = por %p37, %p38
      %p40 = scmp.ne.s32.totalorder %s29, %s30
      %p41 = scmp.eq.s32.totalorder %s21, 0
      %p42 = por %p40, %p41
      %p43 = scmp.ne.s32.totalorder %s29, %s30
      %p44 = scmp.eq.s32.totalorder %s22, 1
      %p45 = por %p43, %p44
      %p47 = scmp.ne.s32.totalorder %s30, %s46
      %p48 = scmp.eq.s32.totalorder %s22, 0
      %p49 = por %p47, %p48
      %s51 = sadd.s32 %s50, 1
      %p54 = scmp.eq.s32.totalorder %s16, 1
      %p55 = scmp.ne.s32.totalorder %s50, %s52
      %p56 = scmp.eq.s32.totalorder %s16, 0
      %p57 = por %p55, %p56
      %p58 = scmp.ne.s32.totalorder %s50, %s52
      %p59 = scmp.eq.s32.totalorder %s21, 1
      %p60 = por %p58, %p59
      %p61 = scmp.ne.s32.totalorder %s52, %s53
      %p62 = scmp.eq.s32.totalorder %s21, 0
      %p63 = por %p61, %p62
      %p64 = scmp.ne.s32.totalorder %s52, %s53
      %p65 = scmp.eq.s32.totalorder %s22, 1
      %p66 = por %p64, %p65
      %p68 = scmp.ne.s32.totalorder %s53, %s67
      %p69 = scmp.eq.s32.totalorder %s22, 0
      %p70 = por %p68, %p69
      %s72 = sadd.s32 %s71, 1
      %p75 = scmp.eq.s32.totalorder %s16, 1
      %p76 = scmp.ne.s32.totalorder %s71, %s73
      %p77 = scmp.eq.s32.totalorder %s16, 0
      %p78 = por %p76, %p77
      %p79 = scmp.ne.s32.totalorder %s71, %s73
      %p80 = scmp.eq.s32.totalorder %s21, 1
      %p81 = por %p79, %p80
      %p82 = scmp.ne.s32.totalorder %s73, %s74
      %p83 = scmp.eq.s32.totalorder %s21, 0
      %p84 = por %p82, %p83
      %p85 = scmp.ne.s32.totalorder %s73, %s74
      %p86 = scmp.eq.s32.totalorder %s22, 1
      %p87 = por %p85, %p86
      %p89 = scmp.ne.s32.totalorder %s74, %s88
      %p90 = scmp.eq.s32.totalorder %s22, 0
      %p91 = por %p89, %p90
      %s93 = sadd.s32 %s92, 1
      %p96 = scmp.eq.s32.totalorder %s16, 1
      %p97 = scmp.ne.s32.totalorder %s92, %s94
      %p98 = scmp.eq.s32.totalorder %s16, 0
      %p99 = por %p97, %p98
      %p100 = scmp.ne.s32.totalorder %s92, %s94
      %p101 = scmp.eq.s32.totalorder %s21, 1
      %p102 = por %p100, %p101
      %p103 = scmp.ne.s32.totalorder %s94, %s95
      %p104 = scmp.eq.s32.totalorder %s21, 0
      %p105 = por %p103, %p104
      %p106 = scmp.ne.s32.totalorder %s94, %s95
      %p107 = scmp.eq.s32.totalorder %s22, 1
      %p108 = por %p106, %p107
      %p110 = scmp.ne.s32.totalorder %s95, %s109
      %p111 = scmp.eq.s32.totalorder %s22, 0
      %p112 = por %p110, %p111
      %s113 = ssub.s32 %s16, %s23
      %p114 = scmp.eq.s32.totalorder %s113, 0
      %s116 = sadd.s32 %s115, 1
      %s117 = scalar_select %p114, %s115, %s116
      %p120 = pneg %p114
      %p121 = scmp.eq.s32.totalorder %s16, 1
      %p122 = por %p120, %p121
      %p123 = scmp.ne.s32.totalorder %s115, %s118
      %p124 = scmp.eq.s32.totalorder %s16, 0
      %p125 = por %p123, %p124
      %p126 = scmp.ne.s32.totalorder %s115, %s118
      %p127 = scmp.eq.s32.totalorder %s21, 1
      %p128 = por %p126, %p127
      %p129 = scmp.ne.s32.totalorder %s118, %s119
      %p130 = scmp.eq.s32.totalorder %s21, 0
      %p131 = por %p129, %p130
      %p132 = scmp.ne.s32.totalorder %s118, %s119
      %p133 = scmp.eq.s32.totalorder %s22, 1
      %p134 = por %p132, %p133
      %p136 = scmp.ne.s32.totalorder %s119, %s135
      %p137 = scmp.eq.s32.totalorder %s22, 0
      %p138 = por %p136, %p137
      %p139 = scmp.le.s32.totalorder 1, %s16
      %p140 = scmp.lt.s32.totalorder %s16, 3
      %p141 = pnand %p139, %p140
      %p142 = pneg %p141
      // Predicated region
      $region9: #{tpu_custom_call.1} parent=5 // pred_check
        _
      $region10: #{tpu_custom_call.1} parent=5 // pred_check_branch
        %144 = sbr.rel (%p141) target = $region12
      $region11: #{tpu_custom_call.1} parent=5 // pred_region
        %s145 = ssub.s32 %s16, 1
        // Predicated region
        $region13: #{tpu_custom_call.1} parent=11 // pred_check
          %p146 = pneg %p63
        $region14: #{tpu_custom_call.1} parent=11 // pred_check_branch
          %148 = sbr.rel (%p146) target = $region16
        $region15: #{tpu_custom_call.1} parent=11 // pred_region
          _
        $region16: #{tpu_custom_call.1} parent=11 // pred_fallthru
          _
        // Predicated region
        $region17: #{tpu_custom_call.1} parent=11 // pred_check
          %p149 = pneg %p84
        $region18: #{tpu_custom_call.1} parent=11 // pred_check_branch
          %151 = sbr.rel (%p149) target = $region20
        $region19: #{tpu_custom_call.1} parent=11 // pred_region
          _
        $region20: #{tpu_custom_call.1} parent=11 // pred_fallthru
          _
        // Predicated region
        $region21: #{tpu_custom_call.1} parent=11 // pred_check
          %p152 = pneg %p105
        $region22: #{tpu_custom_call.1} parent=11 // pred_check_branch
          %154 = sbr.rel (%p152) target = $region24
        $region23: #{tpu_custom_call.1} parent=11 // pred_region
          _
        $region24: #{tpu_custom_call.1} parent=11 // pred_fallthru
          _
      $region12: #{tpu_custom_call.1} parent=5 // pred_fallthru
        _
      %p155 = scmp.lt.s32.totalorder %s16, 2
      // Predicated region
      $region25: #{tpu_custom_call.1} parent=5 // pred_check
        %p156 = pneg %p155
      $region26: #{tpu_custom_call.1} parent=5 // pred_check_branch
        %158 = sbr.rel (%p156) target = $region28
      $region27: #{tpu_custom_call.1} parent=5 // pred_region
        // Predicated region
        $region29: #{tpu_custom_call.1} parent=27 // pred_check
          %p159 = pneg %p36
        $region30: #{tpu_custom_call.1} parent=27 // pred_check_branch
          %161 = sbr.rel (%p159) target = $region32
        $region31: #{tpu_custom_call.1} parent=27 // pred_region
          %s162 = sand.u32 %s26, 1
          %s163 = scalar_lea.sflag [#allocation3], %s162
          %s164 = sand.u32 %s26, 1
          %s165 = smul.addr %s164, 32
          %s166 = scalar_lea.vmem [#allocation2], %s165
          %s168 = ssub.s32 512, 512
          %169 = vsyncadd %s163, %s168
          %s170 = smul.addr %s16, 4
          %s171 = smul.addr %s170, 128
          %s172 = scalar_lea.hbm %s0, %s171
          %s173 = sshll.u32 %s166, 4
          %s174 = int_to_ptr.vmem [resolvable:$true] %s173
          %179 = dma.hbm_to_vmem [thread:$0]  %s172, 512, %s174, %s163, 256, 256, 16
        $region32: #{tpu_custom_call.1} parent=27 // pred_fallthru
          _
      $region28: #{tpu_custom_call.1} parent=5 // pred_fallthru
        _
      %p180 = scmp.le.s32.totalorder 1, %s16
      %p181 = scmp.lt.s32.totalorder %s16, 3
      %p182 = pnand %p180, %p181
      %p183 = pneg %p182
      // Predicated region
      $region33: #{tpu_custom_call.1} parent=5 // pred_check
        _
      $region34: #{tpu_custom_call.1} parent=5 // pred_check_branch
        %185 = sbr.rel (%p182) target = $region36
      $region35: #{tpu_custom_call.1} parent=5 // pred_region
        %s186 = ssub.s32 %s16, 1
        %s187 = sand.u32 %s29, 1
        %s188 = scalar_lea.sflag [#allocation3], %s187
        %s189 = sand.u32 %s29, 1
        %s190 = smul.addr %s189, 32
        %s191 = scalar_lea.vmem [#allocation2], %s190
        // Predicated region
        $region37: #{tpu_custom_call.1} parent=35 // pred_check
          %p192 = pneg %p42
        $region38: #{tpu_custom_call.1} parent=35 // pred_check_branch
          %194 = sbr.rel (%p192) target = $region40
        $region39: #{tpu_custom_call.1} parent=35 // pred_region
          %195 = dma.done %s188, 512
        $region40: #{tpu_custom_call.1} parent=35 // pred_fallthru
          _
        %s196 = sand.u32 %s29, 1
        %s197 = scalar_lea.sflag [#allocation3], %s196
        %s198 = sand.u32 %s29, 1
        %s199 = smul.addr %s198, 32
        %s200 = scalar_lea.vmem [#allocation2], %s199
        %p201 = pneg %p42
        %p202 = pneg %p39
        %p203 = pneg %p63
        %p204 = pneg %p60
        %p205 = pneg %p84
        %p206 = pneg %p81
        %p207 = pneg %p105
        %p208 = pneg %p102
        %p209 = pneg %p131
        %p210 = pneg %p128
        %s211 = sand.u32 %s118, 1
        %s212 = scalar_lea.sflag [#allocation4], %s211
        %s213 = sand.u32 %s118, 1
        %s214 = smul.addr %s213, 32
        %s215 = scalar_lea.vmem [#allocation5], %s214
        %v216 = vld [vmem:[%s191] sm:$0xff]
        %v217 = vld [vmem:[%s191 + $0x8] sm:$0xff]
        %v218 = vld [vmem:[%s191 + $0x10] sm:$0xff]
        %v219 = vld [vmem:[%s191 + $0x18] sm:$0xff]
        %v220 = vadd.f32 %v216, %v217
        %221 = vadd.xlane.f32.xlu0 %v220
        %v222 = vpop.xlane.xlu0 %221
        %v223 = vadd.f32 %v218, %v219
        %224 = vadd.xlane.f32.xlu0 %v223
        %v225 = vpop.xlane.xlu0 %224
        %v226 = vrcp.pop 256.0
        %v227 = vmul.f32 %v222, %v226
        %v228 = vmul.f32 %v225, %v226
        %v229 = vld [vmem:[%s1] sm:$0xff]
        %v230 = vld [vmem:[%s1 + $0x8] sm:$0xff]
        %v231 = vmul.f32 %v229, %v227
        %v232 = vmul.f32 %v230, %v228
        %vm233 = vcmask 7168
        %v234 = vsel %vm233, %v231, 0.0
        %v235 = vsel %vm233, %v232, 0.0
        %v236 = vadd.f32 %v234, %v235
        %v237 = vrot.slane %v236, 4
        %v238 = vadd.f32 %v236, %v237
        %v239 = vrot.slane %v238, 2
        %v240 = vadd.f32 %v238, %v239
        %v241 = vrot.slane %v240, 1
        %v242 = vadd.f32 %v240, %v241
        %v243 = vmax.f32 %v242, 0.0
        %v244 = vld [vmem:[%s2] sm:$0xff]
        %v245 = vld [vmem:[%s2 + $0x8] sm:$0xff]
        %v246 = vmul.f32 %v244, %v243
        %v247 = vmul.f32 %v245, %v243
        %v248 = vadd.f32 %v246, 0.0
        %v249 = vadd.f32 %v247, 0.0
        %v250 = vsub.f32 0.0, %v248
        %v251 = vsub.f32 0.0, %v249
        %v252 = vmul.f32 %v250, 1.442695
        %v253 = vpow.pop %v252
        %v254 = vmul.f32 %v251, 1.442695
        %v255 = vpow.pop %v254
        %v256 = vadd.f32 %v253, 1.0
        %v257 = vadd.f32 %v255, 1.0
        %v258 = vrcp.pop %v256
        %v259 = vmul.f32 1.0, %v258
        %v260 = vrcp.pop %v257
        %v261 = vmul.f32 1.0, %v260
        %v262 = vld [vmem:[%s3] sm:$0xff]
        %v263 = vld [vmem:[%s3 + $0x8] sm:$0xff]
        %265 = vset.pattern.permute.xlu0 0
        %266 = vperm.xlu0 %265, %v262
        %v267 = vpop.permute.xlu0 %266
        %270 = vset.pattern.permute.xlu0 0
        %271 = vperm.xlu0 %270, %v263
        %v272 = vpop.permute.xlu0 %271
        %v274 = vmul.f32 %v216, %v267
        %v275 = vmul.f32 %v217, %v267
        %v276 = vmul.f32 %v218, %v272
        %v277 = vmul.f32 %v219, %v272
        %v278 = vadd.f32 %v274, %v276
        %v279 = vrot.slane %v278, 4
        %v280 = vadd.f32 %v278, %v279
        %v281 = vrot.slane %v280, 2
        %v282 = vadd.f32 %v280, %v281
        %v283 = vrot.slane %v282, 1
        %v284 = vadd.f32 %v282, %v283
        %v285 = vadd.f32 %v275, %v277
        %v286 = vrot.slane %v285, 4
        %v287 = vadd.f32 %v285, %v286
        %v288 = vrot.slane %v287, 2
        %v289 = vadd.f32 %v287, %v288
        %v290 = vrot.slane %v289, 1
        %v291 = vadd.f32 %v289, %v290
        %v292 = vsub.f32 0.0, %v284
        %v293 = vsub.f32 0.0, %v291
        %v294 = vmul.f32 %v292, 1.442695
        %v295 = vpow.pop %v294
        %v296 = vmul.f32 %v293, 1.442695
        %v297 = vpow.pop %v296
        %v298 = vadd.f32 %v295, 1.0
        %v299 = vadd.f32 %v297, 1.0
        %v300 = vrcp.pop %v298
        %v301 = vmul.f32 1.0, %v300
        %v302 = vrcp.pop %v299
        %v303 = vmul.f32 1.0, %v302
        %305 = vset.pattern.permute.xlu0 0
        %306 = vperm.xlu0 %305, %v259
        %v307 = vpop.permute.xlu0 %306
        %310 = vset.pattern.permute.xlu0 0
        %311 = vperm.xlu0 %310, %v261
        %v312 = vpop.permute.xlu0 %311
        %v314 = vadd.f32 %v307, %v301
        %v315 = vadd.f32 %v307, %v303
        %v316 = vadd.f32 %v312, %v301
        %v317 = vadd.f32 %v312, %v303
        %v318 = vmul.f32 %v216, %v314
        %v319 = vmul.f32 %v217, %v315
        %v320 = vmul.f32 %v218, %v316
        %v321 = vmul.f32 %v219, %v317
        %322 = vst [vmem:[%s215] sm:$0xff] %v318
        %323 = vst [vmem:[%s215 + $0x8] sm:$0xff] %v319
        %324 = vst [vmem:[%s215 + $0x10] sm:$0xff] %v320
        %325 = vst [vmem:[%s215 + $0x18] sm:$0xff] %v321
        %s326 = sand.u32 %s118, 1
        %s327 = scalar_lea.sflag [#allocation4], %s326
        %s328 = sand.u32 %s118, 1
        %s329 = smul.addr %s328, 32
        %s330 = scalar_lea.vmem [#allocation5], %s329
        // Predicated region
        $region41: #{tpu_custom_call.1} parent=35 // pred_check
          %p331 = pneg %p128
        $region42: #{tpu_custom_call.1} parent=35 // pred_check_branch
          %333 = sbr.rel (%p331) target = $region44
        $region43: #{tpu_custom_call.1} parent=35 // pred_region
          %s335 = ssub.s32 512, 512
          %336 = vsyncadd %s327, %s335
          %s337 = smul.addr %s21, 4
          %s338 = smul.addr %s337, 128
          %s339 = scalar_lea.hbm %s4, %s338
          %s340 = sshll.u32 %s330, 4
          %s341 = int_to_ptr.vmem [resolvable:$true] %s340
          %346 = dma.vmem_to_hbm [thread:$0]  %s341, 512, %s339, %s327, 256, 256, 16
        $region44: #{tpu_custom_call.1} parent=35 // pred_fallthru
          _
      $region36: #{tpu_custom_call.1} parent=5 // pred_fallthru
        _
      %p347 = scmp.le.s32.totalorder 2, %s16
      // Predicated region
      $region45: #{tpu_custom_call.1} parent=5 // pred_check
        %p348 = pneg %p347
      $region46: #{tpu_custom_call.1} parent=5 // pred_check_branch
        %350 = sbr.rel (%p348) target = $region48
      $region47: #{tpu_custom_call.1} parent=5 // pred_region
        %s351 = ssub.s32 %s16, 2
        // Predicated region
        $region49: #{tpu_custom_call.1} parent=47 // pred_check
          %p352 = pneg %p134
        $region50: #{tpu_custom_call.1} parent=47 // pred_check_branch
          %354 = sbr.rel (%p352) target = $region52
        $region51: #{tpu_custom_call.1} parent=47 // pred_region
          %s355 = sand.u32 %s119, 1
          %s356 = scalar_lea.sflag [#allocation4], %s355
          %s357 = sand.u32 %s119, 1
          %s358 = smul.addr %s357, 32
          %s359 = scalar_lea.vmem [#allocation5], %s358
          %360 = dma.done %s356, 512
        $region52: #{tpu_custom_call.1} parent=47 // pred_fallthru
          _
      $region48: #{tpu_custom_call.1} parent=5 // pred_fallthru
        _
    $region6: #{tpu_custom_call.1} parent=1 // loop_footer
      %s20 = sadd.s32 1, %s16
    $region7: #{tpu_custom_call.1} parent=1 // loop_footer_branch
      %15 = sbr.rel target = $region3
    $region8: #{tpu_custom_call.1} parent=1 // loop_exit
      _
    %361 = vsyncpa [#allocation3], 1
    %s362 = scalar_lea.sflag [#allocation3], 1
    %363 = vsyncpa %s362, 1
    %364 = vsyncpa [#allocation4], 1
    %s365 = scalar_lea.sflag [#allocation4], 1
    %366 = vsyncpa %s365, 1

</llo_original>
